<compile_context>
chip_gen: v5e
topology: v5e:2x2
jax: 0.10.0
libtpu: 0.0.40
codegen_flags: <defaults>
</compile_context>

<pallas_src>
from functools import partial

import jax
import jax.numpy as jnp
from jax import lax
from jax.experimental import pallas as pl
from jax.experimental.pallas import tpu as pltpu

DROP_P = 0.39999995
_KEEP_SCALE = 1.0 / (1.0 - DROP_P)
# keep iff r >= t with r ~ U{0, ..., 2^31 - 1}  =>  P(keep) = 1 - p
_DROP_THRESH_I31 = int(DROP_P * (1 << 31))

# murmur3 finalizer constants (wrapped to signed int32) + golden-ratio mixer.
_M1 = -2048144789    # 0x85ebca6b
_M2 = -1028477387    # 0xc2b2ae35
_GOLD = -1640531527  # 0x9e3779b9


def _mix_i32(h):
    """murmur3-style finalizer on int32 (wrapping mul; logical right shift
    emulated as arithmetic shift + mask so everything stays plain int32)."""
    h = h ^ ((h >> 16) & jnp.int32(0x0000FFFF))
    h = h * jnp.int32(_M1)
    h = h ^ ((h >> 13) & jnp.int32(0x0007FFFF))
    h = h * jnp.int32(_M2)
    h = h ^ ((h >> 16) & jnp.int32(0x0000FFFF))
    return h


def _attn_kernel(seed_ref, x_ref, y_ref, w_ref, o_ref, *, d_x):
    # Fold any needed dtype cast into the kernel (free under MXU latency).
    x = x_ref[...].astype(jnp.float32)
    y = y_ref[...].astype(jnp.float32)

    # Static sub-slices of the packed param slab (zero runtime cost).
    wx = w_ref[0:d_x, :]                 # (d_x, d_out)
    wy = w_ref[d_x:2 * d_x, :]           # (d_x, d_out)
    b = w_ref[2 * d_x:2 * d_x + 1, :]    # (1,   d_out)

    # Fused concat + linear:  [x | y] @ W^T + b  ==  x @ Wx + y @ Wy + b
    q = (jnp.dot(x, wx, preferred_element_type=jnp.float32)
         + jnp.dot(y, wy, preferred_element_type=jnp.float32)
         + b)
    k = q   # same Linear reused -> q == k == v
    v = q

    # q @ k^T without materializing a transpose (contract last dims, NT form).
    qk = lax.dot_general(q, k, (((1,), (1,)), ((), ())),
                         preferred_element_type=jnp.float32)
    qk = qk * jnp.float32(1.0 / 8.0)

    # Numerically-stable softmax over the last dim.
    m = jnp.max(qk, axis=-1, keepdims=True)
    e = jnp.exp(qk - m)
    denom = jnp.sum(e, axis=-1, keepdims=True)
    # Fold softmax normalization and dropout 1/(1-p) rescale into one scale;
    # approx reciprocal runs on the EUP slot off the VPU critical path.
    scale = jnp.float32(_KEEP_SCALE) * pl.reciprocal(denom, approx=True)

    # Dropout keep-mask from a counter-based hash (training-mode F.dropout
    # semantics: drop with prob p, rescale kept entries by 1/(1-p)).
    # TODO(synk): mask will not match PyTorch's RNG stream bit-for-bit.
    bq, bk = qk.shape
    rows = lax.broadcasted_iota(jnp.int32, (bq, bk), 0)
    cols = lax.broadcasted_iota(jnp.int32, (bq, bk), 1)
    idx = rows * jnp.int32(bk) + cols
    h = _mix_i32(idx + seed_ref[0] * jnp.int32(_GOLD))
    r = h & jnp.int32(0x7FFFFFFF)                 # uniform over [0, 2^31)
    keep = r >= jnp.int32(_DROP_THRESH_I31)       # P(keep) = 1 - p
    attn = jnp.where(keep, e * scale, jnp.float32(0.0))

    out = jnp.dot(attn, v, preferred_element_type=jnp.float32)

    # Single store of the true-shaped (B, d_out) result.
    o_ref[...] = out


def prepare_params(weight, bias, d_x):
    """One-time parameter prep (hoisted out of the per-call hot path).

    weight: (D_out, D_in) torch nn.Linear layout; bias: (D_out,).
    Returns one packed slab of shape (D_in + 1, D_out):
      rows [0, d_x)        = Wx (pre-transposed)
      rows [d_x, 2*d_x)    = Wy (pre-transposed)
      row  [2*d_x]         = bias
    """
    w_t = jnp.asarray(weight, jnp.float32).T           # (D_in, D_out)
    b = jnp.asarray(bias, jnp.float32).reshape(1, -1)  # (1,    D_out)
    return jnp.concatenate([w_t, b], axis=0)           # (D_in+1, D_out)


@jax.jit
def model_forward(w_slab, x, y, seed):
    batch = x.shape[0]
    d_x = x.shape[1]
    d_out = w_slab.shape[1]
    seed_arr = jnp.asarray(seed, jnp.int32).reshape((1,))

    return pl.pallas_call(
        partial(_attn_kernel, d_x=d_x),
        out_shape=jax.ShapeDtypeStruct((batch, d_out), jnp.float32),
        in_specs=[
            pl.BlockSpec(memory_space=pltpu.MemorySpace.SMEM),   # seed scalar
            pl.BlockSpec(memory_space=pltpu.MemorySpace.VMEM),   # x
            pl.BlockSpec(memory_space=pltpu.MemorySpace.VMEM),   # y
            pl.BlockSpec(memory_space=pltpu.MemorySpace.VMEM),   # packed W|b
        ],
        out_specs=pl.BlockSpec(memory_space=pltpu.MemorySpace.VMEM),
    )(seed_arr, x, y, w_slab)


if __name__ == "__main__":
    key = jax.random.PRNGKey(0)
    kx, ky, kw, kb = jax.random.split(key, 4)

    B, F_HALF, D_OUT = 2, 3, 8
    D_IN = 2 * F_HALF   # 6 (= 3 + 3, see NOTE above)

    x = jax.random.normal(kx, (B, F_HALF), dtype=jnp.float32)
    y = jax.random.normal(ky, (B, F_HALF), dtype=jnp.float32)

    # Deterministic Linear init (PyTorch-style uniform(-1/sqrt(fan_in), +)).
    bound = 1.0 / (D_IN ** 0.5)
    weight = jax.random.uniform(kw, (D_OUT, D_IN), jnp.float32, -bound, bound)
    bias = jax.random.uniform(kb, (D_OUT,), jnp.float32, -bound, bound)

    w_slab = prepare_params(weight, bias, F_HALF)

    # Vary `seed` per invocation for fresh dropout masks across calls.
    out = model_forward(w_slab, x, y, 0)
    out = jax.block_until_ready(out)

    assert out.shape == (B, D_OUT) and out.dtype == jnp.float32
    assert bool(jnp.all(jnp.isfinite(out)))
    print("KERNEL_OK")
</pallas_src>

<mosaic_0001>
module attributes {stable_mosaic.version = 11 : i64} {
  func.func @_attn_kernel(%arg0: memref<1xi32, #tpu.memory_space<smem>>, %arg1: memref<2x3xf32, #tpu.memory_space<vmem>>, %arg2: memref<2x3xf32, #tpu.memory_space<vmem>>, %arg3: memref<7x8xf32, #tpu.memory_space<vmem>>, %arg4: memref<2x8xf32, #tpu.memory_space<vmem>>) attributes {dimension_semantics = [], scalar_prefetch = 0 : i64, scratch_operands = 0 : i64, tpu.core_type = #tpu.core_type<tc>} {
    %c0 = arith.constant 0 : index
    %c0_0 = arith.constant 0 : index
    %0 = vector.load %arg1[%c0, %c0_0] : memref<2x3xf32, #tpu.memory_space<vmem>>, vector<2x3xf32>
    %c0_1 = arith.constant 0 : index
    %c0_2 = arith.constant 0 : index
    %1 = vector.load %arg2[%c0_1, %c0_2] : memref<2x3xf32, #tpu.memory_space<vmem>>, vector<2x3xf32>
    %c0_3 = arith.constant 0 : index
    %c0_4 = arith.constant 0 : index
    %2 = vector.load %arg3[%c0_3, %c0_4] : memref<7x8xf32, #tpu.memory_space<vmem>>, vector<3x8xf32>
    %c3 = arith.constant 3 : index
    %c0_5 = arith.constant 0 : index
    %3 = vector.load %arg3[%c3, %c0_5] : memref<7x8xf32, #tpu.memory_space<vmem>>, vector<3x8xf32>
    %c6 = arith.constant 6 : index
    %c0_6 = arith.constant 0 : index
    %4 = vector.load %arg3[%c6, %c0_6] : memref<7x8xf32, #tpu.memory_space<vmem>>, vector<1x8xf32>
    %cst = arith.constant dense<0.000000e+00> : vector<2x8xf32>
    %5 = tpu.matmul %0, %2, %cst {dimension_numbers = #tpu.dot_dimension_numbers<[1], [0], [0], [1], [0, 0, 1, 1], [], []>} : vector<2x3xf32>, vector<3x8xf32>, vector<2x8xf32> -> vector<2x8xf32>
    %cst_7 = arith.constant dense<0.000000e+00> : vector<2x8xf32>
    %6 = tpu.matmul %1, %3, %cst_7 {dimension_numbers = #tpu.dot_dimension_numbers<[1], [0], [0], [1], [0, 0, 1, 1], [], []>} : vector<2x3xf32>, vector<3x8xf32>, vector<2x8xf32> -> vector<2x8xf32>
    %7 = arith.addf %5, %6 : vector<2x8xf32>
    %8 = vector.broadcast %4 : vector<1x8xf32> to vector<2x8xf32>
    %9 = arith.addf %7, %8 : vector<2x8xf32>
    %cst_8 = arith.constant dense<0.000000e+00> : vector<2x2xf32>
    %10 = tpu.matmul %9, %9, %cst_8 {dimension_numbers = #tpu.dot_dimension_numbers<[1], [1], [0], [0], [0, 0, 1, 0], [], []>} : vector<2x8xf32>, vector<2x8xf32>, vector<2x2xf32> -> vector<2x2xf32>
    %cst_9 = arith.constant 1.250000e-01 : f32
    %11 = vector.broadcast %cst_9 : f32 to vector<2x2xf32>
    %12 = arith.mulf %10, %11 : vector<2x2xf32>
    %cst_10 = arith.constant dense<0xFF800000> : vector<2xf32>
    %13 = vector.multi_reduction <maximumf>, %12, %cst_10 [1] : vector<2x2xf32> to vector<2xf32>
    %14 = vector.shape_cast %13 : vector<2xf32> to vector<2x1xf32>
    %15 = vector.broadcast %14 : vector<2x1xf32> to vector<2x2xf32>
    %16 = arith.subf %12, %15 : vector<2x2xf32>
    %17 = math.exp %16 : vector<2x2xf32>
    %cst_11 = arith.constant dense<0.000000e+00> : vector<2xf32>
    %18 = vector.multi_reduction <add>, %17, %cst_11 [1] : vector<2x2xf32> to vector<2xf32>
    %19 = vector.shape_cast %18 : vector<2xf32> to vector<2x1xf32>
    %20 = tpu.reciprocal %19 {approx = true} : vector<2x1xf32> -> vector<2x1xf32>
    %cst_12 = arith.constant 1.66666651 : f32
    %21 = vector.broadcast %cst_12 : f32 to vector<2x1xf32>
    %22 = arith.mulf %21, %20 : vector<2x1xf32>
    %23 = tpu.iota {dimensions = array<i32: 0>} : vector<2x2xi32>
    %24 = tpu.iota {dimensions = array<i32: 1>} : vector<2x2xi32>
    %c2_i32 = arith.constant 2 : i32
    %25 = vector.broadcast %c2_i32 : i32 to vector<2x2xi32>
    %26 = arith.muli %23, %25 : vector<2x2xi32>
    %27 = arith.addi %26, %24 : vector<2x2xi32>
    %c0_13 = arith.constant 0 : index
    %28 = memref.load %arg0[%c0_13] : memref<1xi32, #tpu.memory_space<smem>>
    %c-1640531527_i32 = arith.constant -1640531527 : i32
    %29 = arith.muli %28, %c-1640531527_i32 : i32
    %30 = vector.broadcast %29 : i32 to vector<2x2xi32>
    %31 = arith.addi %27, %30 : vector<2x2xi32>
    %c16_i32 = arith.constant 16 : i32
    %32 = vector.broadcast %c16_i32 : i32 to vector<2x2xi32>
    %33 = arith.shrsi %31, %32 : vector<2x2xi32>
    %c65535_i32 = arith.constant 65535 : i32
    %34 = vector.broadcast %c65535_i32 : i32 to vector<2x2xi32>
    %35 = arith.andi %33, %34 : vector<2x2xi32>
    %36 = arith.xori %31, %35 : vector<2x2xi32>
    %c-2048144789_i32 = arith.constant -2048144789 : i32
    %37 = vector.broadcast %c-2048144789_i32 : i32 to vector<2x2xi32>
    %38 = arith.muli %36, %37 : vector<2x2xi32>
    %c13_i32 = arith.constant 13 : i32
    %39 = vector.broadcast %c13_i32 : i32 to vector<2x2xi32>
    %40 = arith.shrsi %38, %39 : vector<2x2xi32>
    %c524287_i32 = arith.constant 524287 : i32
    %41 = vector.broadcast %c524287_i32 : i32 to vector<2x2xi32>
    %42 = arith.andi %40, %41 : vector<2x2xi32>
    %43 = arith.xori %38, %42 : vector<2x2xi32>
    %c-1028477387_i32 = arith.constant -1028477387 : i32
    %44 = vector.broadcast %c-1028477387_i32 : i32 to vector<2x2xi32>
    %45 = arith.muli %43, %44 : vector<2x2xi32>
    %c16_i32_14 = arith.constant 16 : i32
    %46 = vector.broadcast %c16_i32_14 : i32 to vector<2x2xi32>
    %47 = arith.shrsi %45, %46 : vector<2x2xi32>
    %c65535_i32_15 = arith.constant 65535 : i32
    %48 = vector.broadcast %c65535_i32_15 : i32 to vector<2x2xi32>
    %49 = arith.andi %47, %48 : vector<2x2xi32>
    %50 = arith.xori %45, %49 : vector<2x2xi32>
    %c2147483647_i32 = arith.constant 2147483647 : i32
    %51 = vector.broadcast %c2147483647_i32 : i32 to vector<2x2xi32>
    %52 = arith.andi %50, %51 : vector<2x2xi32>
    %c858993351_i32 = arith.constant 858993351 : i32
    %53 = vector.broadcast %c858993351_i32 : i32 to vector<2x2xi32>
    %54 = arith.cmpi sge, %52, %53 : vector<2x2xi32>
    %55 = vector.broadcast %22 : vector<2x1xf32> to vector<2x2xf32>
    %56 = arith.mulf %17, %55 : vector<2x2xf32>
    %cst_16 = arith.constant 0.000000e+00 : f32
    %57 = vector.broadcast %cst_16 : f32 to vector<2x2xf32>
    %58 = arith.select %54, %56, %57 : vector<2x2xi1>, vector<2x2xf32>
    %cst_17 = arith.constant dense<0.000000e+00> : vector<2x8xf32>
    %59 = tpu.matmul %58, %9, %cst_17 {dimension_numbers = #tpu.dot_dimension_numbers<[1], [0], [0], [1], [0, 0, 1, 1], [], []>} : vector<2x2xf32>, vector<2x8xf32>, vector<2x8xf32> -> vector<2x8xf32>
    %c0_18 = arith.constant 0 : index
    %c0_19 = arith.constant 0 : index
    %60 = vector.load %arg4[%c0_18, %c0_19] : memref<2x8xf32, #tpu.memory_space<vmem>>, vector<2x8xf32>
    tpu.vector_store %arg4[%c0_18, %c0_19], %59 {strides = array<i32>} : memref<2x8xf32, #tpu.memory_space<vmem>>, vector<2x8xf32>,
    return
  }
}

</mosaic_0001>

<llo_original>
// kernel: model_forward.1
$region0: #{model_forward.1}
  #allocation0 [shape = 'u32[]', space=smem, size = 0x4, offset = 0x4, fixed_abs, tag = 'smem constant byte address 0x4 - core index']
  #allocation1 [shape = 'u32[72,128]{1,0:T(1,128)}', space=vmem, size = 0x9000, scoped, tag = 'internal scratch']
  #allocation2 [shape = 's32[1]{0:T(128)S(6)}', space=smem, size = 0x200, scoped, tag = 'scoped memory for model_forward.1']
  %s0 = inlined_call_operand.<no memory space> [shape: s32[1], index: 0, kind: input, shape index: {}]
  %s1 = inlined_call_operand.vmem [shape: f32[2,3], index: 1, kind: input, shape index: {}]
  %s2 = inlined_call_operand.vmem [shape: f32[2,3], index: 2, kind: input, shape index: {}]
  %s3 = inlined_call_operand.hbm [shape: f32[7,8], index: 3, kind: input, shape index: {}]
  %s4 = inlined_call_operand.hbm [shape: f32[2,8], index: 4, kind: output, shape index: {}]
  %s5 = sld [smem:[#allocation0]]
  $region30: #{model_forward.1} parent=0
    _
  %s7 = ssub.s32 1, %s5
  %s8 = scalar_select 0, %s7, %s5
  %9 = sst [smem:[#allocation2]] %s0
  $region1: #{model_forward.1} parent=0
    #allocation3 [shape = 'u8[4096]{0}', space=vmem, size = 0x1000, scoped, tag = 'input window, operand 3, single buffered']
    #allocation4 [shape = 's32[1]{0}', space=sflag, size = 0x4, scoped, tag = 'scoped memory for model_forward.1']
    #allocation5 [shape = 's32[1]{0}', space=sflag, size = 0x4, scoped, tag = 'scoped memory for model_forward.1']
    #allocation6 [shape = 'u8[1024]{0}', space=vmem, size = 0x400, scoped, tag = 'output window, operand 0, single buffered']
    %10 = vsyncpa [#allocation4], 0
    %11 = vsyncpa [#allocation5], 0
    // Predicated region
    $region2: #{model_forward.1} parent=1 // pred_check
      _
    $region3: #{model_forward.1} parent=1 // pred_check_branch
      %13 = sbr.rel (0) target = $region5
    $region4: #{model_forward.1} parent=1 // pred_region
      _
    $region5: #{model_forward.1} parent=1 // pred_fallthru
      _
    // Predicated region
    $region6: #{model_forward.1} parent=1 // pred_check
      _
    $region7: #{model_forward.1} parent=1 // pred_check_branch
      %15 = sbr.rel (0) target = $region9
    $region8: #{model_forward.1} parent=1 // pred_region
      _
    $region9: #{model_forward.1} parent=1 // pred_fallthru
      _
    // Predicated region
    $region10: #{model_forward.1} parent=1 // pred_check
      _
    $region11: #{model_forward.1} parent=1 // pred_check_branch
      %17 = sbr.rel (0) target = $region13
    $region12: #{model_forward.1} parent=1 // pred_region
      _
    $region13: #{model_forward.1} parent=1 // pred_fallthru
      _
    // Predicated region
    $region14: #{model_forward.1} parent=1 // pred_check
      _
    $region15: #{model_forward.1} parent=1 // pred_check_branch
      %19 = sbr.rel (0) target = $region17
    $region16: #{model_forward.1} parent=1 // pred_region
      %21 = vsyncadd [#allocation4], 0
      %s23 = sshll.u32 %s3, 4
      %s24 = int_to_ptr.hbm [resolvable:$true] %s23
      %s25 = sshll.u32 [#allocation3], 4
      %s26 = int_to_ptr.vmem [resolvable:$true] %s25
      %28 = dma.hbm_to_vmem [thread:$0]  %s24, 128, %s26, [#allocation4]
    $region17: #{model_forward.1} parent=1 // pred_fallthru
      _
    // Predicated region
    $region18: #{model_forward.1} parent=1 // pred_check
      _
    $region19: #{model_forward.1} parent=1 // pred_check_branch
      %30 = sbr.rel (0) target = $region21
    $region20: #{model_forward.1} parent=1 // pred_region
      %32 = dma.done [#allocation4], 128
    $region21: #{model_forward.1} parent=1 // pred_fallthru
      _
    %v33 = vld [vmem:[%s1] sm:$0x3]
    %v34 = vld [vmem:[%s2] sm:$0x3]
    %v35 = vld [vmem:[#allocation3] sm:$0x7]
    %v36 = vld [vmem:[#allocation3 + $0x3] sm:$0x7]
    %v37 = vld [vmem:[#allocation3 + $0x6] sm:$0x1]
    %vm38 = vcmask 23552
    %v40 = vsel %vm38, %v34, 0
    %vm42 = vcmask 1042432
    %v44 = vsel %vm42, %v36, 0
    %46 = vmatpush.msra.mxu0 0.0
    %47 = vmatpush.msra.mxu0 0.0
    %48 = vmatpush.msra.mxu0 0.0
    %49 = vmatpush.msra.mxu0 0.0
    %50 = vmatpush.msra.mxu0 0.0
    %51 = vmatpush.msra.mxu0 0.0
    %52 = vmatpush.msra.mxu0 0.0
    %53 = vmatpush.msra.mxu0 0.0
    %54 = vmatpush.msra.mxu0 0.0
    %55 = vmatpush.msra.mxu0 0.0
    %56 = vmatpush.msra.mxu0 0.0
    %57 = vmatpush.msra.mxu0 0.0
    %58 = vmatpush.msra.mxu0 0.0
    %59 = vmatpush.msra.mxu0 0.0
    %60 = vmatpush.msra.mxu0 0.0
    %61 = vmatpush.msra.mxu0 %v44
    %62 = vmatmul.f32.gmra.mxu0 %v40
    %v63 = vpop.f32.mrf.mxu0
    %v64 = vadd.f32 0.0, %v63
    %65 = vdwg.mxu0
    %v67 = vsel %vm38, %v33, 0
    %v70 = vsel %vm42, %v35, 0
    %72 = vmatpush.msra.mxu0 0.0
    %73 = vmatpush.msra.mxu0 0.0
    %74 = vmatpush.msra.mxu0 0.0
    %75 = vmatpush.msra.mxu0 0.0
    %76 = vmatpush.msra.mxu0 0.0
    %77 = vmatpush.msra.mxu0 0.0
    %78 = vmatpush.msra.mxu0 0.0
    %79 = vmatpush.msra.mxu0 0.0
    %80 = vmatpush.msra.mxu0 0.0
    %81 = vmatpush.msra.mxu0 0.0
    %82 = vmatpush.msra.mxu0 0.0
    %83 = vmatpush.msra.mxu0 0.0
    %84 = vmatpush.msra.mxu0 0.0
    %85 = vmatpush.msra.mxu0 0.0
    %86 = vmatpush.msra.mxu0 0.0
    %87 = vmatpush.msra.mxu0 %v70
    %88 = vmatmul.f32.gmra.mxu0 %v67
    %v89 = vpop.f32.mrf.mxu0
    %v90 = vadd.f32 %v64, %v89
    %91 = vdwg.mxu0
    %v92 = vperm.slane %v37, 0
    %v93 = vadd.f32 %v90, %v92
    %vm94 = vcmask 64512
    %v96 = vsel %vm94, %v93, 0
    %98 = vmatpush.xpose.msra.mxu0 0.0
    %99 = vmatpush.xpose.msra.mxu0 0.0
    %100 = vmatpush.xpose.msra.mxu0 0.0
    %101 = vmatpush.xpose.msra.mxu0 0.0
    %102 = vmatpush.xpose.msra.mxu0 0.0
    %103 = vmatpush.xpose.msra.mxu0 0.0
    %104 = vmatpush.xpose.msra.mxu0 0.0
    %105 = vmatpush.xpose.msra.mxu0 0.0
    %106 = vmatpush.xpose.msra.mxu0 0.0
    %107 = vmatpush.xpose.msra.mxu0 0.0
    %108 = vmatpush.xpose.msra.mxu0 0.0
    %109 = vmatpush.xpose.msra.mxu0 0.0
    %110 = vmatpush.xpose.msra.mxu0 0.0
    %111 = vmatpush.xpose.msra.mxu0 0.0
    %112 = vmatpush.xpose.msra.mxu0 0.0
    %113 = vmatpush.xpose.msra.mxu0 %v96
    %114 = vmatmul.f32.gmra.mxu0 %v96
    %v115 = vpop.f32.mrf.mxu0
    %v116 = vadd.f32 0.0, %v115
    %117 = vdwg.mxu0
    %v118 = vmul.f32 %v116, 0.125
    %vm119 = vcmask 9216
    %v120 = vsel %vm119, %v118, -inf
    %121 = vmax.xlane.f32.xlu0 %v120
    %v122 = vpop.xlane.xlu0 %121
    %v123 = vsub.f32 %v118, %v122
    %v124 = vmul.f32 %v123, 1.442695
    %v125 = vpow.pop %v124
    %v126 = vsel %vm119, %v125, 0.0
    %127 = vadd.xlane.f32.xlu0 %v126
    %v128 = vpop.xlane.xlu0 %127
    %v129 = vrcp.pop %v128
    %v130 = vmul.f32 %v129, 1.6666665
    %v131 = vlaneseq
    %v132 = vshrl.u32 %v131, 7
    %v133 = vlaneseq
    %v134 = vand.u32 %v133, 127
    %v135 = vmul.u32 %v132, 2
    %v136 = vadd.s32 %v135, %v134
    %s137 = sld [smem:[#allocation2]]
    %s138 = smul.u32 %s137, 2654435769
    %v139 = vstv %s138
    %v140 = vadd.s32 %v136, %v139
    %v141 = vshra.s32 %v140, 16
    %v142 = vand.u32 %v141, 65535
    %v143 = vxor.u32 %v140, %v142
    %v144 = vmul.u32 %v143, 2246822507
    %v145 = vshra.s32 %v144, 13
    %v146 = vand.u32 %v145, 524287
    %v147 = vxor.u32 %v144, %v146
    %v148 = vmul.u32 %v147, 3266489909
    %v149 = vshra.s32 %v148, 16
    %v150 = vand.u32 %v149, 65535
    %v151 = vxor.u32 %v148, %v150
    %v152 = vand.u32 %v151, 2147483647
    %vm153 = vcmp.ge.s32.totalorder %v152, 858993351
    %v154 = vmul.f32 %v125, %v130
    %v155 = vsel %vm153, %v154, 0.0
    %vm156 = vcmask 15360
    %v158 = vsel %vm156, %v155, 0
    %vm160 = vcmask 1041408
    %v161 = vsel %vm160, %v93, 0
    %163 = vmatpush.msra.mxu0 0.0
    %164 = vmatpush.msra.mxu0 0.0
    %165 = vmatpush.msra.mxu0 0.0
    %166 = vmatpush.msra.mxu0 0.0
    %167 = vmatpush.msra.mxu0 0.0
    %168 = vmatpush.msra.mxu0 0.0
    %169 = vmatpush.msra.mxu0 0.0
    %170 = vmatpush.msra.mxu0 0.0
    %171 = vmatpush.msra.mxu0 0.0
    %172 = vmatpush.msra.mxu0 0.0
    %173 = vmatpush.msra.mxu0 0.0
    %174 = vmatpush.msra.mxu0 0.0
    %175 = vmatpush.msra.mxu0 0.0
    %176 = vmatpush.msra.mxu0 0.0
    %177 = vmatpush.msra.mxu0 0.0
    %178 = vmatpush.msra.mxu0 %v161
    %179 = vmatmul.f32.gmra.mxu0 %v158
    %v180 = vpop.f32.mrf.mxu0
    %v181 = vadd.f32 0.0, %v180
    %182 = vdwg.mxu0
    %vm183 = vcmask 58368
    %184 = vst.msk [vmem:[#allocation6] sm:$0x3] %vm183, %v181
    // Predicated region
    $region22: #{model_forward.1} parent=1 // pred_check
      _
    $region23: #{model_forward.1} parent=1 // pred_check_branch
      %186 = sbr.rel (0) target = $region25
    $region24: #{model_forward.1} parent=1 // pred_region
      %188 = vsyncadd [#allocation5], 0
      %s190 = sshll.u32 [#allocation6], 4
      %s191 = int_to_ptr.vmem [resolvable:$true] %s190
      %s192 = sshll.u32 %s4, 4
      %s193 = int_to_ptr.hbm [resolvable:$true] %s192
      %195 = dma.vmem_to_hbm [thread:$0]  %s191, 32, %s193, [#allocation5]
    $region25: #{model_forward.1} parent=1 // pred_fallthru
      _
    // Predicated region
    $region26: #{model_forward.1} parent=1 // pred_check
      _
    $region27: #{model_forward.1} parent=1 // pred_check_branch
      %197 = sbr.rel (0) target = $region29
    $region28: #{model_forward.1} parent=1 // pred_region
      %199 = dma.done [#allocation5], 32
    $region29: #{model_forward.1} parent=1 // pred_fallthru
      _
    %200 = vsyncpa [#allocation4], 1
    %201 = vsyncpa [#allocation5], 1

</llo_original>
